<compile_context>
chip_gen: v5e
topology: v5e:2x2
jax: 0.10.0
libtpu: 0.0.40
codegen_flags: <defaults>
</compile_context>

<pallas_src>
import functools

import jax
import jax.numpy as jnp
from jax.experimental import pallas as pl
from jax.experimental.pallas import tpu as pltpu


# Weights whose BlockSpec index_map is constant across the grid carry the same data
# every step, so the default 2-deep pipeline buffers only double their VMEM
# footprint.  main() falls back to the default if this build rejects Buffered(1).
_SINGLE_BUFFER_WEIGHTS = True


# ---------------------------------------------------------------------------
# small helpers
# ---------------------------------------------------------------------------
def _round_up(x, m):
    return (x + m - 1) // m * m


def _pick_tile(total, candidates):
    for c in candidates:
        if c <= total and total % c == 0:
            return c
    return total


def _wspec(shape, index_map):
    """BlockSpec for operands whose index_map is constant across the grid."""
    if _SINGLE_BUFFER_WEIGHTS:
        return pl.BlockSpec(shape, index_map, pipeline_mode=pl.Buffered(1))
    return pl.BlockSpec(shape, index_map)


def _cparams(dim_sem):
    return pltpu.CompilerParams(
        dimension_semantics=dim_sem,
        vmem_limit_bytes=64 << 20,   # raise the 32 MiB default scoped VMEM limit
    )


def _layernorm(x, w, b, eps=1e-5):
    mu = jnp.mean(x, axis=-1, keepdims=True)
    var = jnp.mean((x - mu) ** 2, axis=-1, keepdims=True)
    return (x - mu) * jax.lax.rsqrt(var + eps) * w + b


# ---------------------------------------------------------------------------
# patch-embedding projection kernel (stride=kernel conv as a row-tiled matmul)
# ---------------------------------------------------------------------------
def patch_embed_kernel(p_ref, w_ref, b_ref, o_ref):
    o_ref[...] = (
        jnp.dot(p_ref[...].astype(jnp.bfloat16), w_ref[...],
                preferred_element_type=jnp.float32)
        + b_ref[...]
    ).astype(o_ref.dtype)


def patch_embed(patches2d, w, b, *, tile_m):
    M, P = patches2d.shape
    D = w.shape[1]
    return pl.pallas_call(
        patch_embed_kernel,
        out_shape=jax.ShapeDtypeStruct((M, D), jnp.float32),
        grid=(M // tile_m,),
        in_specs=[
            pl.BlockSpec((tile_m, P), lambda i: (i, 0)),
            _wspec((P, D), lambda i: (0, 0)),
            _wspec((1, D), lambda i: (0, 0)),
        ],
        out_specs=pl.BlockSpec((tile_m, D), lambda i: (i, 0)),
        compiler_params=_cparams(("parallel",)),
    )(patches2d, w, b)


# ---------------------------------------------------------------------------
# attention half of the encoder block: LN1 -> MHSA -> residual
# one batch element per grid step
# ---------------------------------------------------------------------------
def attention_kernel(x_ref, ln1w_ref, ln1b_ref, wqkv_ref, bqkv_ref,
                     wo_ref, bo_ref, o_ref, *, num_heads, seq_valid):
    x = x_ref[0]                                       # (S, D) f32
    S, D = x.shape
    Dh = D // num_heads
    scale = jnp.float32(1.0 / (Dh ** 0.5))

    h = _layernorm(x, ln1w_ref[...], ln1b_ref[...]).astype(jnp.bfloat16)
    qkv = (jnp.dot(h, wqkv_ref[...], preferred_element_type=jnp.float32)
           + bqkv_ref[...])                            # (S, 3D) f32, one fused matmul
    q = qkv[:, 0 * D:1 * D] * scale
    k = qkv[:, 1 * D:2 * D]
    v = qkv[:, 2 * D:3 * D]

    # mask padded key columns (sequence was padded to S in glue)
    col_ids = jax.lax.broadcasted_iota(jnp.int32, (1, S), 1)
    kmask = col_ids < seq_valid

    wo = wo_ref[...]                                   # (D, D) bf16
    attn_out = jnp.zeros((S, D), jnp.float32)
    for hh in range(num_heads):
        sl = slice(hh * Dh, (hh + 1) * Dh)
        qh = q[:, sl].astype(jnp.bfloat16)
        kh = k[:, sl].astype(jnp.bfloat16)
        vh = v[:, sl].astype(jnp.bfloat16)
        # qh @ kh.T without an explicit transpose
        scores = jax.lax.dot_general(
            qh, kh, (((1,), (1,)), ((), ())),
            preferred_element_type=jnp.float32)        # (S, S) f32
        scores = jnp.where(kmask, scores, jnp.float32(-1e30))
        # manual softmax: the divide becomes an EUP approx reciprocal
        m = jnp.max(scores, axis=-1, keepdims=True)
        e = jnp.exp(scores - m)
        denom = jnp.sum(e, axis=-1, keepdims=True)
        probs = e * pl.reciprocal(denom, approx=True)
        ctx = jnp.dot(probs.astype(jnp.bfloat16), vh,
                      preferred_element_type=jnp.float32)     # (S, Dh)
        # fold the output projection per head -> no lane-axis concatenate
        attn_out += jnp.dot(ctx.astype(jnp.bfloat16), wo[sl, :],
                            preferred_element_type=jnp.float32)

    # TODO(synk): attention-output dropout is an eval-mode no-op here.
    o_ref[0] = (x + attn_out + bo_ref[...]).astype(o_ref.dtype)


def attention_block(x, p, *, num_heads, seq_valid):
    B, S, D = x.shape
    kernel = functools.partial(attention_kernel, num_heads=num_heads,
                               seq_valid=seq_valid)
    return pl.pallas_call(
        kernel,
        out_shape=jax.ShapeDtypeStruct((B, S, D), jnp.float32),
        grid=(B,),
        in_specs=[
            pl.BlockSpec((1, S, D), lambda b: (b, 0, 0)),
            _wspec((1, D), lambda b: (0, 0)),          # ln1 w
            _wspec((1, D), lambda b: (0, 0)),          # ln1 b
            _wspec((D, 3 * D), lambda b: (0, 0)),      # fused qkv weight (bf16)
            _wspec((1, 3 * D), lambda b: (0, 0)),      # qkv bias
            _wspec((D, D), lambda b: (0, 0)),          # out-proj weight (bf16)
            _wspec((1, D), lambda b: (0, 0)),          # out-proj bias
        ],
        out_specs=pl.BlockSpec((1, S, D), lambda b: (b, 0, 0)),
        compiler_params=_cparams(("parallel",)),
    )(x, p["ln1w"], p["ln1b"], p["wqkv"], p["bqkv"], p["wo"], p["bo"])


# ---------------------------------------------------------------------------
# FFN half of the encoder block: LN2 -> Linear -> GELU -> Linear -> residual
# token-wise, so rows are tiled as a parallel axis; F is a streamed reduction
# axis with a VMEM accumulator (w1/w2 arrive as (D,tF)/(tF,D) tiles).
# ---------------------------------------------------------------------------
def ffn_kernel(x_ref, ln2w_ref, ln2b_ref, w1_ref, b1_ref, w2_ref, b2_ref,
               o_ref, acc_ref):
    f = pl.program_id(1)
    x = x_ref[...]                                     # (tR, D) f32

    @pl.when(f == 0)
    def _():
        acc_ref[...] = x + b2_ref[...]                 # residual + final bias, once

    # LN2 is recomputed per F-tile; it is O(D) per row vs O(2*tF) matmul work.
    h = _layernorm(x, ln2w_ref[...], ln2b_ref[...]).astype(jnp.bfloat16)
    ff = (jnp.dot(h, w1_ref[...], preferred_element_type=jnp.float32)
          + b1_ref[...])
    ff = jax.nn.gelu(ff, approximate=False)            # nn.GELU() default = exact erf
    acc_ref[...] += jnp.dot(ff.astype(jnp.bfloat16), w2_ref[...],
                            preferred_element_type=jnp.float32)

    # TODO(synk): FFN dropout layers are eval-mode no-ops here.
    @pl.when(f == pl.num_programs(1) - 1)
    def _():
        o_ref[...] = acc_ref[...].astype(o_ref.dtype)


def ffn_block(x2d, p, *, tile_r, tile_f):
    M, D = x2d.shape
    F = p["w1"].shape[1]
    return pl.pallas_call(
        ffn_kernel,
        out_shape=jax.ShapeDtypeStruct((M, D), jnp.float32),
        grid=(M // tile_r, F // tile_f),
        in_specs=[
            pl.BlockSpec((tile_r, D), lambda r, f: (r, 0)),
            _wspec((1, D), lambda r, f: (0, 0)),             # ln2 w
            _wspec((1, D), lambda r, f: (0, 0)),             # ln2 b
            pl.BlockSpec((D, tile_f), lambda r, f: (0, f)),  # w1 streams over F
            pl.BlockSpec((1, tile_f), lambda r, f: (0, f)),  # b1 streams over F
            pl.BlockSpec((tile_f, D), lambda r, f: (f, 0)),  # w2 streams over F
            _wspec((1, D), lambda r, f: (0, 0)),             # b2
        ],
        out_specs=pl.BlockSpec((tile_r, D), lambda r, f: (r, 0)),
        scratch_shapes=[pltpu.VMEM((tile_r, D), jnp.float32)],
        compiler_params=_cparams(("parallel", "arbitrary")),
    )(x2d, p["ln2w"], p["ln2b"], p["w1"], p["b1"], p["w2"], p["b2"])


# ---------------------------------------------------------------------------
# final LayerNorm (cls token) + classification head (lane-padded output)
# ---------------------------------------------------------------------------
def head_kernel(cls_ref, lnw_ref, lnb_ref, w_ref, b_ref, o_ref):
    h = _layernorm(cls_ref[...], lnw_ref[...], lnb_ref[...])
    o_ref[...] = (
        jnp.dot(h.astype(jnp.bfloat16), w_ref[...],
                preferred_element_type=jnp.float32) + b_ref[...]
    ).astype(o_ref.dtype)


def head(cls_tok, lnw, lnb, w, b):
    B, D = cls_tok.shape
    Cp = w.shape[1]
    return pl.pallas_call(
        head_kernel,
        out_shape=jax.ShapeDtypeStruct((B, Cp), jnp.float32),
        grid=(1,),
        in_specs=[
            pl.BlockSpec((B, D), lambda i: (0, 0)),
            _wspec((1, D), lambda i: (0, 0)),
            _wspec((1, D), lambda i: (0, 0)),
            _wspec((D, Cp), lambda i: (0, 0)),
            _wspec((1, Cp), lambda i: (0, 0)),
        ],
        out_specs=pl.BlockSpec((B, Cp), lambda i: (0, 0)),
        compiler_params=_cparams(("arbitrary",)),
    )(cls_tok, lnw, lnb, w, b)


# ---------------------------------------------------------------------------
# full VisionTransformer forward
# ---------------------------------------------------------------------------
def vit_forward(x_nchw, params, *, patch_size, num_heads, depth, num_classes):
    B, C, H, W = x_nchw.shape
    p = patch_size
    Hp, Wp = H // p, W // p
    N = Hp * Wp
    D = params["proj_w"].shape[1]
    F = params["blocks"][0]["w1"].shape[1]

    # unfold NCHW -> (B*N, C*p*p) patches (matches conv with stride = kernel)
    xp = x_nchw.reshape(B, C, Hp, p, Wp, p).transpose(0, 2, 4, 1, 3, 5)
    patches = xp.reshape(B * N, C * p * p).astype(jnp.float32)

    tile_m = _pick_tile(B * N, (512, 256, 128, 64, 32, 16, 8))
    tok = patch_embed(patches, params["proj_w"], params["proj_b"],
                      tile_m=tile_m).reshape(B, N, D)

    # cls token + positional embedding (glue); pos_drop is an eval-mode no-op
    cls = jnp.broadcast_to(params["cls_token"], (B, 1, D))
    x = jnp.concatenate([cls, tok], axis=1) + params["pos_embedding"]

    # pad the sequence to a sublane/lane friendly length (padded key columns are
    # masked out of softmax inside the attention kernel; padded rows are sliced off)
    S_valid = N + 1
    S_pad = _round_up(S_valid, 128) if S_valid > 64 else _round_up(S_valid, 8)
    x = jnp.pad(x, ((0, 0), (0, S_pad - S_valid), (0, 0)))

    M2 = B * S_pad
    tile_r = _pick_tile(M2, (512, 256, 128, 64, 32, 16, 8))
    tile_f = _pick_tile(F, (512, 256, 128))

    for l in range(depth):
        blk = params["blocks"][l]
        x = attention_block(x, blk, num_heads=num_heads, seq_valid=S_valid)
        # FFN is token-wise: flatten so the row axis is a parallel grid axis
        # (keeps both v7x TensorCores busy even for B == 1).
        x = ffn_block(x.reshape(M2, D), blk,
                      tile_r=tile_r, tile_f=tile_f).reshape(B, S_pad, D)

    # final LayerNorm + head on the cls token only (LayerNorm is per-token, so
    # norm-then-slice == slice-then-norm); head output lane-padded, slice back.
    cls_out = x[:, 0, :]
    logits = head(cls_out, params["norm_w"], params["norm_b"],
                  params["head_w"], params["head_b"])
    return logits[:, :num_classes]


# ---------------------------------------------------------------------------
# deterministic parameter construction (kernel-ready layout: bf16 MXU weights,
# f32 LN params / biases, lane-padded classifier head)
# ---------------------------------------------------------------------------
def make_params(key, *, image_size, patch_size, in_channels, embedding_dim,
                depth, ff_dim, num_classes):
    D, F = embedding_dim, ff_dim
    P = in_channels * patch_size * patch_size
    N = (image_size // patch_size) ** 2
    C_pad = _round_up(num_classes, 128)

    keys = iter(jax.random.split(key, 16 + 8 * depth))

    def nrm(shape, scale=0.02):
        return (scale * jax.random.normal(next(keys), shape)).astype(jnp.float32)

    params = {
        # conv weight (D, C, p, p) flattened to a (C*p*p, D) matmul weight
        "proj_w": nrm((D, P)).T.reshape(P, D).astype(jnp.bfloat16),
        "proj_b": jnp.zeros((1, D), jnp.float32),
        "cls_token": nrm((1, 1, D), scale=1.0),
        "pos_embedding": nrm((1, N + 1, D), scale=1.0),
        "norm_w": jnp.ones((1, D), jnp.float32),
        "norm_b": jnp.zeros((1, D), jnp.float32),
        # head weight padded on the class (lane) axis to a multiple of 128
        "head_w": jnp.zeros((D, C_pad), jnp.bfloat16)
                     .at[:, :num_classes].set(nrm((D, num_classes)).astype(jnp.bfloat16)),
        "head_b": jnp.zeros((1, C_pad), jnp.float32),
        "blocks": [],
    }
    for _ in range(depth):
        blk = {
            "ln1w": jnp.ones((1, D), jnp.float32),
            "ln1b": jnp.zeros((1, D), jnp.float32),
            "wqkv": nrm((D, 3 * D)).astype(jnp.bfloat16),
            "bqkv": jnp.zeros((1, 3 * D), jnp.float32),
            "wo": nrm((D, D)).astype(jnp.bfloat16),
            "bo": jnp.zeros((1, D), jnp.float32),
            "ln2w": jnp.ones((1, D), jnp.float32),
            "ln2b": jnp.zeros((1, D), jnp.float32),
            "w1": nrm((D, F)).astype(jnp.bfloat16),
            "b1": jnp.zeros((1, F), jnp.float32),
            "w2": nrm((F, D)).astype(jnp.bfloat16),
            "b2": jnp.zeros((1, D), jnp.float32),
        }
        params["blocks"].append(blk)
    return params


# ---------------------------------------------------------------------------
# main
# ---------------------------------------------------------------------------
if __name__ == "__main__":
    image_size = 16
    patch_size = 4
    in_channels = 4
    embedding_dim = 32
    depth = 2
    num_attn_heads = 4
    ff_dim = 64
    num_classes = 10
    batch = 2

    key = jax.random.PRNGKey(0)
    pkey, xkey = jax.random.split(key)
    params = make_params(
        pkey,
        image_size=image_size, patch_size=patch_size, in_channels=in_channels,
        embedding_dim=embedding_dim, depth=depth, ff_dim=ff_dim,
        num_classes=num_classes,
    )
    x = jax.random.normal(
        xkey, (batch, in_channels, image_size, image_size), jnp.float32
    )

    run = functools.partial(
        vit_forward, x, params, patch_size=patch_size,
        num_heads=num_attn_heads, depth=depth, num_classes=num_classes)
    try:
        logits = jax.block_until_ready(run())
    except Exception:
        # TODO(synk): fall back to default double-buffered weight pipelining if
        # this jax build rejects pl.Buffered(1) for constant-index operands.
        _SINGLE_BUFFER_WEIGHTS = False
        logits = jax.block_until_ready(run())

    assert logits.shape == (batch, num_classes)
    assert bool(jnp.all(jnp.isfinite(logits)))
    print("KERNEL_OK")
</pallas_src>

<mosaic_0001>
module attributes {stable_mosaic.version = 11 : i64} {
  func.func @patch_embed_kernel(%arg0: i32, %arg1: memref<32x64xf32, #tpu.memory_space<vmem>>, %arg2: memref<64x32xbf16, #tpu.memory_space<vmem>>, %arg3: memref<1x32xf32, #tpu.memory_space<vmem>>, %arg4: memref<32x32xf32, #tpu.memory_space<vmem>>) attributes {dimension_semantics = [#tpu.dimension_semantics<parallel>], iteration_bounds = array<i64: 1>, scalar_prefetch = 0 : i64, scratch_operands = 0 : i64, tpu.core_type = #tpu.core_type<tc>, window_params = [{transform_indices = @transform_0, window_bounds = array<i64: 32, 64>}, {pipeline_mode = #tpu.pipeline_mode<synchronous>, transform_indices = @transform_1, window_bounds = array<i64: 64, 32>}, {pipeline_mode = #tpu.pipeline_mode<synchronous>, transform_indices = @transform_2, window_bounds = array<i64: 1, 32>}, {transform_indices = @transform_3, window_bounds = array<i64: 32, 32>}]} {
    %c0 = arith.constant 0 : index
    %c0_0 = arith.constant 0 : index
    %0 = vector.load %arg1[%c0, %c0_0] : memref<32x64xf32, #tpu.memory_space<vmem>>, vector<32x64xf32>
    %1 = arith.truncf %0 : vector<32x64xf32> to vector<32x64xbf16>
    %c0_1 = arith.constant 0 : index
    %c0_2 = arith.constant 0 : index
    %2 = vector.load %arg2[%c0_1, %c0_2] : memref<64x32xbf16, #tpu.memory_space<vmem>>, vector<64x32xbf16>
    %cst = arith.constant dense<0.000000e+00> : vector<32x32xf32>
    %3 = tpu.matmul %1, %2, %cst {dimension_numbers = #tpu.dot_dimension_numbers<[1], [0], [0], [1], [0, 0, 1, 1], [], []>} : vector<32x64xbf16>, vector<64x32xbf16>, vector<32x32xf32> -> vector<32x32xf32>
    %c0_3 = arith.constant 0 : index
    %c0_4 = arith.constant 0 : index
    %4 = vector.load %arg3[%c0_3, %c0_4] : memref<1x32xf32, #tpu.memory_space<vmem>>, vector<1x32xf32>
    %5 = vector.broadcast %4 : vector<1x32xf32> to vector<32x32xf32>
    %6 = arith.addf %3, %5 : vector<32x32xf32>
    %c0_5 = arith.constant 0 : index
    %c0_6 = arith.constant 0 : index
    %7 = vector.load %arg4[%c0_5, %c0_6] : memref<32x32xf32, #tpu.memory_space<vmem>>, vector<32x32xf32>
    tpu.vector_store %arg4[%c0_5, %c0_6], %6 {strides = array<i32>} : memref<32x32xf32, #tpu.memory_space<vmem>>, vector<32x32xf32>,
    return
  }
  func.func @transform_0(%arg0: i32) -> (i32, i32) {
    %c0_i32 = arith.constant 0 : i32
    %c0_i32_0 = arith.constant 0 : i32
    return %arg0, %c0_i32 : i32, i32
  }
  func.func @transform_1(%arg0: i32) -> (i32, i32) {
    %c0_i32 = arith.constant 0 : i32
    %c0_i32_0 = arith.constant 0 : i32
    %c0_i32_1 = arith.constant 0 : i32
    return %c0_i32, %c0_i32_0 : i32, i32
  }
  func.func @transform_2(%arg0: i32) -> (i32, i32) {
    %c0_i32 = arith.constant 0 : i32
    %c0_i32_0 = arith.constant 0 : i32
    %c0_i32_1 = arith.constant 0 : i32
    return %c0_i32, %c0_i32_0 : i32, i32
  }
  func.func @transform_3(%arg0: i32) -> (i32, i32) {
    %c0_i32 = arith.constant 0 : i32
    %c0_i32_0 = arith.constant 0 : i32
    return %arg0, %c0_i32 : i32, i32
  }
}

module attributes {stable_mosaic.version = 11 : i64} {
  func.func @patch_embed_kernel(%arg0: i32, %arg1: memref<32x64xf32, #tpu.memory_space<vmem>>, %arg2: memref<64x32xbf16, #tpu.memory_space<vmem>>, %arg3: memref<1x32xf32, #tpu.memory_space<vmem>>, %arg4: memref<32x32xf32, #tpu.memory_space<vmem>>) attributes {dimension_semantics = [#tpu.dimension_semantics<parallel>], iteration_bounds = array<i64: 1>, scalar_prefetch = 0 : i64, scratch_operands = 0 : i64, tpu.core_type = #tpu.core_type<tc>, window_params = [{transform_indices = @transform_0, window_bounds = array<i64: 32, 64>}, {pipeline_mode = #tpu.pipeline_mode<synchronous>, transform_indices = @transform_1, window_bounds = array<i64: 64, 32>}, {pipeline_mode = #tpu.pipeline_mode<synchronous>, transform_indices = @transform_2, window_bounds = array<i64: 1, 32>}, {transform_indices = @transform_3, window_bounds = array<i64: 32, 32>}]} {
    %c0 = arith.constant 0 : index
    %c0_0 = arith.constant 0 : index
    %0 = vector.load %arg1[%c0, %c0_0] : memref<32x64xf32, #tpu.memory_space<vmem>>, vector<32x64xf32>
    %1 = arith.truncf %0 : vector<32x64xf32> to vector<32x64xbf16>
    %c0_1 = arith.constant 0 : index
    %c0_2 = arith.constant 0 : index
    %2 = vector.load %arg2[%c0_1, %c0_2] : memref<64x32xbf16, #tpu.memory_space<vmem>>, vector<64x32xbf16>
    %cst = arith.constant dense<0.000000e+00> : vector<32x32xf32>
    %3 = tpu.matmul %1, %2, %cst {dimension_numbers = #tpu.dot_dimension_numbers<[1], [0], [0], [1], [0, 0, 1, 1], [], []>} : vector<32x64xbf16>, vector<64x32xbf16>, vector<32x32xf32> -> vector<32x32xf32>
    %c0_3 = arith.constant 0 : index
    %c0_4 = arith.constant 0 : index
    %4 = vector.load %arg3[%c0_3, %c0_4] : memref<1x32xf32, #tpu.memory_space<vmem>>, vector<1x32xf32>
    %5 = vector.broadcast %4 : vector<1x32xf32> to vector<32x32xf32>
    %6 = arith.addf %3, %5 : vector<32x32xf32>
    %c0_5 = arith.constant 0 : index
    %c0_6 = arith.constant 0 : index
    %7 = vector.load %arg4[%c0_5, %c0_6] : memref<32x32xf32, #tpu.memory_space<vmem>>, vector<32x32xf32>
    tpu.vector_store %arg4[%c0_5, %c0_6], %6 {strides = array<i32>} : memref<32x32xf32, #tpu.memory_space<vmem>>, vector<32x32xf32>,
    return
  }
  func.func @transform_0(%arg0: i32) -> (i32, i32) {
    %c0_i32 = arith.constant 0 : i32
    %c0_i32_0 = arith.constant 0 : i32
    return %arg0, %c0_i32 : i32, i32
  }
  func.func @transform_1(%arg0: i32) -> (i32, i32) {
    %c0_i32 = arith.constant 0 : i32
    %c0_i32_0 = arith.constant 0 : i32
    %c0_i32_1 = arith.constant 0 : i32
    return %c0_i32, %c0_i32_0 : i32, i32
  }
  func.func @transform_2(%arg0: i32) -> (i32, i32) {
    %c0_i32 = arith.constant 0 : i32
    %c0_i32_0 = arith.constant 0 : i32
    %c0_i32_1 = arith.constant 0 : i32
    return %c0_i32, %c0_i32_0 : i32, i32
  }
  func.func @transform_3(%arg0: i32) -> (i32, i32) {
    %c0_i32 = arith.constant 0 : i32
    %c0_i32_0 = arith.constant 0 : i32
    return %arg0, %c0_i32 : i32, i32
  }
}

</mosaic_0001>

<llo_original>
// kernel: tpu_custom_call.1
$region0: #{tpu_custom_call.1}
  #allocation0 [shape = 'u32[]', space=smem, size = 0x4, offset = 0x4, fixed_abs, tag = 'smem constant byte address 0x4 - core index']
  #allocation1 [shape = 'u32[72,128]{1,0:T(1,128)}', space=vmem, size = 0x9000, scoped, tag = 'internal scratch']
  %s0 = inlined_call_operand.vmem [shape: f32[32,64], index: 0, kind: input, shape index: {}]
  %s1 = inlined_call_operand.vmem [shape: bf16[64,32], index: 1, kind: input, shape index: {}]
  %s2 = inlined_call_operand.vmem [shape: f32[1,32], index: 2, kind: input, shape index: {}]
  %s3 = inlined_call_operand.hbm [shape: f32[32,32], index: 3, kind: output, shape index: {}]
  %s4 = sld [smem:[#allocation0]]
  $region22: #{tpu_custom_call.1} parent=0
    _
  %s6 = ssub.s32 1, %s4
  %s7 = scalar_select 0, %s6, %s4
  $region1: #{tpu_custom_call.1} parent=0
    #allocation2 [shape = 'u8[16384]{0}', space=vmem, size = 0x4000, scoped, tag = 'output window, operand 0, single buffered']
    #allocation3 [shape = 's32[1]{0}', space=sflag, size = 0x4, scoped, tag = 'scoped memory for tpu_custom_call.1']
    %8 = vsyncpa [#allocation3], 0
    // Predicated region
    $region2: #{tpu_custom_call.1} parent=1 // pred_check
      _
    $region3: #{tpu_custom_call.1} parent=1 // pred_check_branch
      %10 = sbr.rel (0) target = $region5
    $region4: #{tpu_custom_call.1} parent=1 // pred_region
      _
    $region5: #{tpu_custom_call.1} parent=1 // pred_fallthru
      _
    // Predicated region
    $region6: #{tpu_custom_call.1} parent=1 // pred_check
      _
    $region7: #{tpu_custom_call.1} parent=1 // pred_check_branch
      %12 = sbr.rel (0) target = $region9
    $region8: #{tpu_custom_call.1} parent=1 // pred_region
      _
    $region9: #{tpu_custom_call.1} parent=1 // pred_fallthru
      _
    // Predicated region
    $region10: #{tpu_custom_call.1} parent=1 // pred_check
      _
    $region11: #{tpu_custom_call.1} parent=1 // pred_check_branch
      %14 = sbr.rel (0) target = $region13
    $region12: #{tpu_custom_call.1} parent=1 // pred_region
      _
    $region13: #{tpu_custom_call.1} parent=1 // pred_fallthru
      _
    %v16 = vld [vmem:[%s0] sm:$0xff]
    %v17 = vld [vmem:[%s0 + $0x8] sm:$0xff]
    %v18 = vld [vmem:[%s0 + $0x10] sm:$0xff]
    %v19 = vld [vmem:[%s0 + $0x18] sm:$0xff]
    %v20 = vpack.c.bf16 %v17, %v16
    %v21 = vpack.c.bf16 %v19, %v18
    %v22 = vld [vmem:[%s1] sm:$0xf]
    %v23 = vld [vmem:[%s1 + $0x4] sm:$0xf]
    %v24 = vld [vmem:[%s1 + $0x8] sm:$0xf]
    %v25 = vld [vmem:[%s1 + $0xc] sm:$0xf]
    %v26 = vld [vmem:[%s1 + $0x10] sm:$0xf]
    %v27 = vld [vmem:[%s1 + $0x14] sm:$0xf]
    %v28 = vld [vmem:[%s1 + $0x18] sm:$0xf]
    %v29 = vld [vmem:[%s1 + $0x1c] sm:$0xf]
    %v30 = vld [vmem:[%s2] sm:$0x1]
    %v32 = vperm.slane %v30, 0
    %v42 = vunpack.c.l.b16 %v22
    %v43 = vunpack.c.l.b16 %v23
    %v44 = vunpack.c.l.b16 %v24
    %v45 = vunpack.c.l.b16 %v25
    %v46 = vunpack.c.l.b16 %v26
    %v47 = vunpack.c.l.b16 %v27
    %v48 = vunpack.c.l.b16 %v28
    %v49 = vunpack.c.l.b16 %v29
    %v50 = vpack.c.b16 %v43, %v42
    %v51 = vpack.c.b16 %v45, %v44
    %v52 = vpack.c.b16 %v47, %v46
    %v53 = vpack.c.b16 %v49, %v48
    %vm58 = vcmask 523264
    %v60 = vsel %vm58, %v20, 0
    %v63 = vsel %vm58, %v21, 0
    %65 = vmatpush.bf16.msra.mxu0 0
    %66 = vmatpush.bf16.msra.mxu0 0
    %67 = vmatpush.bf16.msra.mxu0 0
    %68 = vmatpush.bf16.msra.mxu0 0
    %69 = vmatpush.bf16.msra.mxu0 %v53
    %70 = vmatpush.bf16.msra.mxu0 %v52
    %71 = vmatpush.bf16.msra.mxu0 %v51
    %72 = vmatpush.bf16.msra.mxu0 %v50
    %73 = vmatmul.bf16.gmra.mxu0 %v60
    %v74 = vpop.f32.mrf.mxu0
    %v75 = vadd.f32 %v32, %v74
    %v76 = vpop.f32.mrf.mxu0
    %v77 = vadd.f32 %v32, %v76
    %78 = vmatmul.bf16.gmra.mxu0 %v63
    %v79 = vpop.f32.mrf.mxu0
    %v80 = vadd.f32 %v32, %v79
    %v81 = vpop.f32.mrf.mxu0
    %v82 = vadd.f32 %v32, %v81
    %83 = vdwg.mxu0
    %vm84 = vcmask 261120
    %85 = vst.msk [vmem:[#allocation2] sm:$0xff] %vm84, %v75
    %86 = vst.msk [vmem:[#allocation2 + $0x8] sm:$0xff] %vm84, %v77
    %87 = vst.msk [vmem:[#allocation2 + $0x10] sm:$0xff] %vm84, %v80
    %88 = vst.msk [vmem:[#allocation2 + $0x18] sm:$0xff] %vm84, %v82
    // Predicated region
    $region14: #{tpu_custom_call.1} parent=1 // pred_check
      _
    $region15: #{tpu_custom_call.1} parent=1 // pred_check_branch
      %90 = sbr.rel (0) target = $region17
    $region16: #{tpu_custom_call.1} parent=1 // pred_region
      %92 = vsyncadd [#allocation3], 0
      %s93 = sshll.u32 [#allocation2], 4
      %s94 = int_to_ptr.vmem [resolvable:$true] %s93
      %s95 = sshll.u32 %s3, 4
      %s96 = int_to_ptr.hbm [resolvable:$true] %s95
      %101 = dma.vmem_to_hbm [thread:$0]  %s94, 512, %s96, [#allocation3], 128, 128, 8
    $region17: #{tpu_custom_call.1} parent=1 // pred_fallthru
      _
    // Predicated region
    $region18: #{tpu_custom_call.1} parent=1 // pred_check
      _
    $region19: #{tpu_custom_call.1} parent=1 // pred_check_branch
      %103 = sbr.rel (0) target = $region21
    $region20: #{tpu_custom_call.1} parent=1 // pred_region
      %105 = dma.done [#allocation3], 512
    $region21: #{tpu_custom_call.1} parent=1 // pred_fallthru
      _
    %106 = vsyncpa [#allocation3], 1

// kernel: tpu_custom_call.1
$region0: #{tpu_custom_call.1}
  #allocation0 [shape = 'u32[]', space=smem, size = 0x4, offset = 0x4, fixed_abs, tag = 'smem constant byte address 0x4 - core index']
  #allocation1 [shape = 'u32[72,128]{1,0:T(1,128)}', space=vmem, size = 0x9000, scoped, tag = 'internal scratch']
  %s0 = inlined_call_operand.vmem [shape: f32[32,64], index: 0, kind: input, shape index: {}]
  %s1 = inlined_call_operand.vmem [shape: bf16[64,32], index: 1, kind: input, shape index: {}]
  %s2 = inlined_call_operand.vmem [shape: f32[1,32], index: 2, kind: input, shape index: {}]
  %s3 = inlined_call_operand.hbm [shape: f32[32,32], index: 3, kind: output, shape index: {}]
  %s4 = sld [smem:[#allocation0]]
  $region22: #{tpu_custom_call.1} parent=0
    _
  %s6 = ssub.s32 1, %s4
  %s7 = scalar_select 0, %s6, %s4
  $region1: #{tpu_custom_call.1} parent=0
    #allocation2 [shape = 'u8[16384]{0}', space=vmem, size = 0x4000, scoped, tag = 'output window, operand 0, single buffered']
    #allocation3 [shape = 's32[1]{0}', space=sflag, size = 0x4, scoped, tag = 'scoped memory for tpu_custom_call.1']
    %8 = vsyncpa [#allocation3], 0
    // Predicated region
    $region2: #{tpu_custom_call.1} parent=1 // pred_check
      _
    $region3: #{tpu_custom_call.1} parent=1 // pred_check_branch
      %10 = sbr.rel (0) target = $region5
    $region4: #{tpu_custom_call.1} parent=1 // pred_region
      _
    $region5: #{tpu_custom_call.1} parent=1 // pred_fallthru
      _
    // Predicated region
    $region6: #{tpu_custom_call.1} parent=1 // pred_check
      _
    $region7: #{tpu_custom_call.1} parent=1 // pred_check_branch
      %12 = sbr.rel (0) target = $region9
    $region8: #{tpu_custom_call.1} parent=1 // pred_region
      _
    $region9: #{tpu_custom_call.1} parent=1 // pred_fallthru
      _
    // Predicated region
    $region10: #{tpu_custom_call.1} parent=1 // pred_check
      _
    $region11: #{tpu_custom_call.1} parent=1 // pred_check_branch
      %14 = sbr.rel (0) target = $region13
    $region12: #{tpu_custom_call.1} parent=1 // pred_region
      _
    $region13: #{tpu_custom_call.1} parent=1 // pred_fallthru
      _
    %v16 = vld [vmem:[%s0] sm:$0xff]
    %v17 = vld [vmem:[%s0 + $0x8] sm:$0xff]
    %v18 = vld [vmem:[%s0 + $0x10] sm:$0xff]
    %v19 = vld [vmem:[%s0 + $0x18] sm:$0xff]
    %v20 = vpack.c.bf16 %v17, %v16
    %v21 = vpack.c.bf16 %v19, %v18
    %v22 = vld [vmem:[%s1] sm:$0xf]
    %v23 = vld [vmem:[%s1 + $0x4] sm:$0xf]
    %v24 = vld [vmem:[%s1 + $0x8] sm:$0xf]
    %v25 = vld [vmem:[%s1 + $0xc] sm:$0xf]
    %v26 = vld [vmem:[%s1 + $0x10] sm:$0xf]
    %v27 = vld [vmem:[%s1 + $0x14] sm:$0xf]
    %v28 = vld [vmem:[%s1 + $0x18] sm:$0xf]
    %v29 = vld [vmem:[%s1 + $0x1c] sm:$0xf]
    %v30 = vld [vmem:[%s2] sm:$0x1]
    %v32 = vperm.slane %v30, 0
    %v42 = vunpack.c.l.b16 %v22
    %v43 = vunpack.c.l.b16 %v23
    %v44 = vunpack.c.l.b16 %v24
    %v45 = vunpack.c.l.b16 %v25
    %v46 = vunpack.c.l.b16 %v26
    %v47 = vunpack.c.l.b16 %v27
    %v48 = vunpack.c.l.b16 %v28
    %v49 = vunpack.c.l.b16 %v29
    %v50 = vpack.c.b16 %v43, %v42
    %v51 = vpack.c.b16 %v45, %v44
    %v52 = vpack.c.b16 %v47, %v46
    %v53 = vpack.c.b16 %v49, %v48
    %vm58 = vcmask 523264
    %v60 = vsel %vm58, %v20, 0
    %v63 = vsel %vm58, %v21, 0
    %65 = vmatpush.bf16.msra.mxu0 0
    %66 = vmatpush.bf16.msra.mxu0 0
    %67 = vmatpush.bf16.msra.mxu0 0
    %68 = vmatpush.bf16.msra.mxu0 0
    %69 = vmatpush.bf16.msra.mxu0 %v53
    %70 = vmatpush.bf16.msra.mxu0 %v52
    %71 = vmatpush.bf16.msra.mxu0 %v51
    %72 = vmatpush.bf16.msra.mxu0 %v50
    %73 = vmatmul.bf16.gmra.mxu0 %v60
    %v74 = vpop.f32.mrf.mxu0
    %v75 = vadd.f32 %v32, %v74
    %v76 = vpop.f32.mrf.mxu0
    %v77 = vadd.f32 %v32, %v76
    %78 = vmatmul.bf16.gmra.mxu0 %v63
    %v79 = vpop.f32.mrf.mxu0
    %v80 = vadd.f32 %v32, %v79
    %v81 = vpop.f32.mrf.mxu0
    %v82 = vadd.f32 %v32, %v81
    %83 = vdwg.mxu0
    %vm84 = vcmask 261120
    %85 = vst.msk [vmem:[#allocation2] sm:$0xff] %vm84, %v75
    %86 = vst.msk [vmem:[#allocation2 + $0x8] sm:$0xff] %vm84, %v77
    %87 = vst.msk [vmem:[#allocation2 + $0x10] sm:$0xff] %vm84, %v80
    %88 = vst.msk [vmem:[#allocation2 + $0x18] sm:$0xff] %vm84, %v82
    // Predicated region
    $region14: #{tpu_custom_call.1} parent=1 // pred_check
      _
    $region15: #{tpu_custom_call.1} parent=1 // pred_check_branch
      %90 = sbr.rel (0) target = $region17
    $region16: #{tpu_custom_call.1} parent=1 // pred_region
      %92 = vsyncadd [#allocation3], 0
      %s93 = sshll.u32 [#allocation2], 4
      %s94 = int_to_ptr.vmem [resolvable:$true] %s93
      %s95 = sshll.u32 %s3, 4
      %s96 = int_to_ptr.hbm [resolvable:$true] %s95
      %101 = dma.vmem_to_hbm [thread:$0]  %s94, 512, %s96, [#allocation3], 128, 128, 8
    $region17: #{tpu_custom_call.1} parent=1 // pred_fallthru
      _
    // Predicated region
    $region18: #{tpu_custom_call.1} parent=1 // pred_check
      _
    $region19: #{tpu_custom_call.1} parent=1 // pred_check_branch
      %103 = sbr.rel (0) target = $region21
    $region20: #{tpu_custom_call.1} parent=1 // pred_region
      %105 = dma.done [#allocation3], 512
    $region21: #{tpu_custom_call.1} parent=1 // pred_fallthru
      _
    %106 = vsyncpa [#allocation3], 1

</llo_original>
